<compile_context>
chip_gen: v6e
topology: v6e:2x2x1
jax: 0.10.0
libtpu: 0.0.40
codegen_flags: <defaults>
</compile_context>

<pallas_src>
import jax
import jax.numpy as jnp
from jax import lax
from jax.experimental import pallas as pl
from jax.experimental.pallas import tpu as pltpu


def textcat_kernel(off_ref, tok_ref, emb_t_ref, fcw_ref, bias_ref, out_ref):
    # off_ref   : SMEM (B,)    int32  (scalar prefetch) -- EmbeddingBag offsets
    # tok_ref   : VMEM (N, 1)  int32  -- flat token ids (one per sublane row)
    # emb_t_ref : VMEM (D, V)  f32    -- embedding table, transposed (V lane-dense)
    # fcw_ref   : VMEM (C, D)  f32    -- nn.Linear weight, PyTorch (C, D) layout
    # bias_ref  : VMEM (1, C)  f32
    # out_ref   : VMEM (B, C)  f32
    N = tok_ref.shape[0]
    D, V = emb_t_ref.shape
    B, C = out_ref.shape

    # (N, V) one-hot: ONE vectorized compare, vocab axis on lanes (12 vregs).
    v_iota = lax.broadcasted_iota(jnp.int32, (N, V), 1)
    onehot = (v_iota == tok_ref[...]).astype(jnp.float32)                # (N, V)

    # (B, N) mean-normalized segment mask, built in vregs. B is tiny & static
    # -> unrolled Python loop; only the per-bag bounds come from SMEM scalars.
    b_iota = lax.broadcasted_iota(jnp.int32, (B, N), 0)
    n_iota = lax.broadcasted_iota(jnp.int32, (B, N), 1)
    seg = jnp.zeros((B, N), jnp.float32)
    for b in range(B):
        start = off_ref[b]
        end = off_ref[b + 1] if b + 1 < B else N          # last bag ends at static N
        inv = 1.0 / jnp.maximum((end - start).astype(jnp.float32), 1.0)  # empty bag -> 0
        bag = (b_iota == b) & (n_iota >= start) & (n_iota < end)
        seg = seg + bag.astype(jnp.float32) * inv

    # (B,N)@(N,V) -> (B,V): per-bag mean vocab counts (register resident).
    counts = jnp.dot(seg, onehot, preferred_element_type=jnp.float32)

    # EmbeddingBag + Linear fold, against lane-dense weights (both trans_b):
    #   (B,V) . (D,V)^T -> (B,D)   then   (B,D) . (C,D)^T -> (B,C)
    embedded = lax.dot_general(counts, emb_t_ref[...],
                               (((1,), (1,)), ((), ())),
                               preferred_element_type=jnp.float32)
    logits = lax.dot_general(embedded, fcw_ref[...],
                             (((1,), (1,)), ((), ())),
                             preferred_element_type=jnp.float32)
    out_ref[...] = logits + bias_ref[...]


def dummy_textcat_forward(inputs_ids, offsets, emb_table, fc_w, fc_b):
    """inputs_ids: (N,) int32; offsets: (B,) int32; returns logits (B, C)."""
    N = inputs_ids.shape[0]
    B = offsets.shape[0]
    V, D = emb_table.shape
    C = fc_w.shape[0]

    tok_col = inputs_ids.astype(jnp.int32).reshape(N, 1)                 # (N, 1)
    off = offsets.astype(jnp.int32)                                      # (B,)
    # (D, V) keeps the 512-wide vocab axis on lanes (contiguous DMA, no lane
    # padding).  In a real training step this transpose / the reshapes above are
    # static per-weight layout work and should be hoisted out of the hot path.
    emb_t = emb_table.T                                                  # (D, V)
    bias = fc_b.reshape(1, C)                                            # (1, C)

    grid_spec = pltpu.PrefetchScalarGridSpec(
        num_scalar_prefetch=1,            # offsets -> SMEM, passed to kernel first
        grid=(1,),
        in_specs=[
            pl.BlockSpec((N, 1), lambda i, off_r: (0, 0)),   # token ids
            pl.BlockSpec((D, V), lambda i, off_r: (0, 0)),   # emb_table^T
            pl.BlockSpec((C, D), lambda i, off_r: (0, 0)),   # fc weight
            pl.BlockSpec((1, C), lambda i, off_r: (0, 0)),   # fc bias
        ],
        out_specs=pl.BlockSpec((B, C), lambda i, off_r: (0, 0)),
    )

    return pl.pallas_call(
        textcat_kernel,
        out_shape=jax.ShapeDtypeStruct((B, C), jnp.float32),
        grid_spec=grid_spec,
        compiler_params=pltpu.CompilerParams(
            dimension_semantics=("arbitrary",)),
    )(off, tok_col, emb_t, fc_w, bias)


def reference_forward(inputs_ids, offsets, emb_table, fc_w, fc_b):
    N = inputs_ids.shape[0]
    off_ext = jnp.concatenate([offsets, jnp.array([N], jnp.int32)])
    emb_tok = emb_table[inputs_ids]                                      # (N, D)
    seg = ((jnp.arange(N)[None, :] >= off_ext[:-1, None]) &
           (jnp.arange(N)[None, :] < off_ext[1:, None])).astype(jnp.float32)
    counts = jnp.maximum(seg.sum(axis=1, keepdims=True), 1.0)
    embedded = (seg @ emb_tok) / counts
    return embedded @ fc_w.T + fc_b


if __name__ == "__main__":
    # config: vocab_size=512, embed_dim=16, num_class=2
    V, D, C = 512, 16, 2
    N_TOKENS, B_BAGS = 24, 4

    key = jax.random.PRNGKey(0)
    k_emb, k_w, k_tok = jax.random.split(key, 3)

    # init_weights(): uniform(-0.5, 0.5) for embedding and fc weight, zero bias
    emb_table = jax.random.uniform(k_emb, (V, D), jnp.float32, -0.5, 0.5)
    fc_w = jax.random.uniform(k_w, (C, D), jnp.float32, -0.5, 0.5)
    fc_b = jnp.zeros((C,), jnp.float32)

    inputs_ids = jax.random.randint(k_tok, (N_TOKENS,), 0, V, jnp.int32)
    offsets = jnp.array([0, 5, 12, 18], jnp.int32)                       # (B,)

    logits = dummy_textcat_forward(inputs_ids, offsets, emb_table, fc_w, fc_b)
    jax.block_until_ready(logits)

    ref = reference_forward(inputs_ids, offsets, emb_table, fc_w, fc_b)
    assert logits.shape == (B_BAGS, C)
    assert jnp.allclose(logits, ref, atol=1e-5, rtol=1e-5), (logits, ref)

    print("KERNEL_OK")
</pallas_src>

<mosaic_0001>
module attributes {stable_mosaic.version = 11 : i64} {
  func.func @textcat_kernel(%arg0: i32, %arg1: memref<4xi32, #tpu.memory_space<smem>>, %arg2: memref<24x1xi32, #tpu.memory_space<vmem>>, %arg3: memref<16x512xf32, #tpu.memory_space<vmem>>, %arg4: memref<2x16xf32, #tpu.memory_space<vmem>>, %arg5: memref<1x2xf32, #tpu.memory_space<vmem>>, %arg6: memref<4x2xf32, #tpu.memory_space<vmem>>) attributes {dimension_semantics = [#tpu.dimension_semantics<arbitrary>], iteration_bounds = array<i64: 1>, scalar_prefetch = 1 : i64, scratch_operands = 0 : i64, tpu.core_type = #tpu.core_type<tc>, window_params = [{pipeline_mode = #tpu.pipeline_mode<synchronous>, transform_indices = @transform_0, window_bounds = array<i64: 24, 1>}, {pipeline_mode = #tpu.pipeline_mode<synchronous>, transform_indices = @transform_1, window_bounds = array<i64: 16, 512>}, {pipeline_mode = #tpu.pipeline_mode<synchronous>, transform_indices = @transform_2, window_bounds = array<i64: 2, 16>}, {pipeline_mode = #tpu.pipeline_mode<synchronous>, transform_indices = @transform_3, window_bounds = array<i64: 1, 2>}, {pipeline_mode = #tpu.pipeline_mode<synchronous>, transform_indices = @transform_4, window_bounds = array<i64: 4, 2>}]} {
    %0 = tpu.iota {dimensions = array<i32: 1>} : vector<24x512xi32>
    %c0 = arith.constant 0 : index
    %c0_0 = arith.constant 0 : index
    %1 = vector.load %arg2[%c0, %c0_0] : memref<24x1xi32, #tpu.memory_space<vmem>>, vector<24x1xi32>
    %2 = vector.broadcast %1 : vector<24x1xi32> to vector<24x512xi32>
    %3 = arith.cmpi eq, %0, %2 : vector<24x512xi32>
    %4 = arith.extui %3 : vector<24x512xi1> to vector<24x512xi32>
    %5 = arith.sitofp %4 : vector<24x512xi32> to vector<24x512xf32>
    %6 = tpu.iota {dimensions = array<i32: 0>} : vector<4x24xi32>
    %7 = tpu.iota {dimensions = array<i32: 1>} : vector<4x24xi32>
    %cst = arith.constant 0.000000e+00 : f32
    %8 = vector.broadcast %cst : f32 to vector<4x24xf32>
    %c0_1 = arith.constant 0 : index
    %9 = memref.load %arg1[%c0_1] : memref<4xi32, #tpu.memory_space<smem>>
    %c1 = arith.constant 1 : index
    %10 = memref.load %arg1[%c1] : memref<4xi32, #tpu.memory_space<smem>>
    %11 = arith.subi %10, %9 : i32
    %12 = arith.sitofp %11 : i32 to f32
    %cst_2 = arith.constant 1.000000e+00 : f32
    %13 = arith.maximumf %12, %cst_2 : f32
    %cst_3 = arith.constant 1.000000e+00 : f32
    %14 = arith.divf %cst_3, %13 : f32
    %c0_i32 = arith.constant 0 : i32
    %15 = vector.broadcast %c0_i32 : i32 to vector<4x24xi32>
    %16 = arith.cmpi eq, %6, %15 : vector<4x24xi32>
    %17 = vector.broadcast %9 : i32 to vector<4x24xi32>
    %18 = arith.cmpi sge, %7, %17 : vector<4x24xi32>
    %19 = arith.andi %16, %18 : vector<4x24xi1>
    %20 = vector.broadcast %10 : i32 to vector<4x24xi32>
    %21 = arith.cmpi slt, %7, %20 : vector<4x24xi32>
    %22 = arith.andi %19, %21 : vector<4x24xi1>
    %23 = arith.extui %22 : vector<4x24xi1> to vector<4x24xi32>
    %24 = arith.sitofp %23 : vector<4x24xi32> to vector<4x24xf32>
    %25 = vector.broadcast %14 : f32 to vector<4x24xf32>
    %26 = arith.mulf %24, %25 : vector<4x24xf32>
    %27 = arith.addf %8, %26 : vector<4x24xf32>
    %c1_4 = arith.constant 1 : index
    %28 = memref.load %arg1[%c1_4] : memref<4xi32, #tpu.memory_space<smem>>
    %c2 = arith.constant 2 : index
    %29 = memref.load %arg1[%c2] : memref<4xi32, #tpu.memory_space<smem>>
    %30 = arith.subi %29, %28 : i32
    %31 = arith.sitofp %30 : i32 to f32
    %cst_5 = arith.constant 1.000000e+00 : f32
    %32 = arith.maximumf %31, %cst_5 : f32
    %cst_6 = arith.constant 1.000000e+00 : f32
    %33 = arith.divf %cst_6, %32 : f32
    %c1_i32 = arith.constant 1 : i32
    %34 = vector.broadcast %c1_i32 : i32 to vector<4x24xi32>
    %35 = arith.cmpi eq, %6, %34 : vector<4x24xi32>
    %36 = vector.broadcast %28 : i32 to vector<4x24xi32>
    %37 = arith.cmpi sge, %7, %36 : vector<4x24xi32>
    %38 = arith.andi %35, %37 : vector<4x24xi1>
    %39 = vector.broadcast %29 : i32 to vector<4x24xi32>
    %40 = arith.cmpi slt, %7, %39 : vector<4x24xi32>
    %41 = arith.andi %38, %40 : vector<4x24xi1>
    %42 = arith.extui %41 : vector<4x24xi1> to vector<4x24xi32>
    %43 = arith.sitofp %42 : vector<4x24xi32> to vector<4x24xf32>
    %44 = vector.broadcast %33 : f32 to vector<4x24xf32>
    %45 = arith.mulf %43, %44 : vector<4x24xf32>
    %46 = arith.addf %27, %45 : vector<4x24xf32>
    %c2_7 = arith.constant 2 : index
    %47 = memref.load %arg1[%c2_7] : memref<4xi32, #tpu.memory_space<smem>>
    %c3 = arith.constant 3 : index
    %48 = memref.load %arg1[%c3] : memref<4xi32, #tpu.memory_space<smem>>
    %49 = arith.subi %48, %47 : i32
    %50 = arith.sitofp %49 : i32 to f32
    %cst_8 = arith.constant 1.000000e+00 : f32
    %51 = arith.maximumf %50, %cst_8 : f32
    %cst_9 = arith.constant 1.000000e+00 : f32
    %52 = arith.divf %cst_9, %51 : f32
    %c2_i32 = arith.constant 2 : i32
    %53 = vector.broadcast %c2_i32 : i32 to vector<4x24xi32>
    %54 = arith.cmpi eq, %6, %53 : vector<4x24xi32>
    %55 = vector.broadcast %47 : i32 to vector<4x24xi32>
    %56 = arith.cmpi sge, %7, %55 : vector<4x24xi32>
    %57 = arith.andi %54, %56 : vector<4x24xi1>
    %58 = vector.broadcast %48 : i32 to vector<4x24xi32>
    %59 = arith.cmpi slt, %7, %58 : vector<4x24xi32>
    %60 = arith.andi %57, %59 : vector<4x24xi1>
    %61 = arith.extui %60 : vector<4x24xi1> to vector<4x24xi32>
    %62 = arith.sitofp %61 : vector<4x24xi32> to vector<4x24xf32>
    %63 = vector.broadcast %52 : f32 to vector<4x24xf32>
    %64 = arith.mulf %62, %63 : vector<4x24xf32>
    %65 = arith.addf %46, %64 : vector<4x24xf32>
    %c3_10 = arith.constant 3 : index
    %66 = memref.load %arg1[%c3_10] : memref<4xi32, #tpu.memory_space<smem>>
    %c24_i32 = arith.constant 24 : i32
    %67 = arith.subi %c24_i32, %66 : i32
    %68 = arith.sitofp %67 : i32 to f32
    %cst_11 = arith.constant 1.000000e+00 : f32
    %69 = arith.maximumf %68, %cst_11 : f32
    %cst_12 = arith.constant 1.000000e+00 : f32
    %70 = arith.divf %cst_12, %69 : f32
    %c3_i32 = arith.constant 3 : i32
    %71 = vector.broadcast %c3_i32 : i32 to vector<4x24xi32>
    %72 = arith.cmpi eq, %6, %71 : vector<4x24xi32>
    %73 = vector.broadcast %66 : i32 to vector<4x24xi32>
    %74 = arith.cmpi sge, %7, %73 : vector<4x24xi32>
    %75 = arith.andi %72, %74 : vector<4x24xi1>
    %c24_i32_13 = arith.constant 24 : i32
    %76 = vector.broadcast %c24_i32_13 : i32 to vector<4x24xi32>
    %77 = arith.cmpi slt, %7, %76 : vector<4x24xi32>
    %78 = arith.andi %75, %77 : vector<4x24xi1>
    %79 = arith.extui %78 : vector<4x24xi1> to vector<4x24xi32>
    %80 = arith.sitofp %79 : vector<4x24xi32> to vector<4x24xf32>
    %81 = vector.broadcast %70 : f32 to vector<4x24xf32>
    %82 = arith.mulf %80, %81 : vector<4x24xf32>
    %83 = arith.addf %65, %82 : vector<4x24xf32>
    %cst_14 = arith.constant dense<0.000000e+00> : vector<4x512xf32>
    %84 = tpu.matmul %83, %5, %cst_14 {dimension_numbers = #tpu.dot_dimension_numbers<[1], [0], [0], [1], [0, 0, 1, 1], [], []>} : vector<4x24xf32>, vector<24x512xf32>, vector<4x512xf32> -> vector<4x512xf32>
    %c0_15 = arith.constant 0 : index
    %c0_16 = arith.constant 0 : index
    %85 = vector.load %arg3[%c0_15, %c0_16] : memref<16x512xf32, #tpu.memory_space<vmem>>, vector<16x512xf32>
    %cst_17 = arith.constant dense<0.000000e+00> : vector<4x16xf32>
    %86 = tpu.matmul %84, %85, %cst_17 {dimension_numbers = #tpu.dot_dimension_numbers<[1], [1], [0], [0], [0, 0, 1, 0], [], []>} : vector<4x512xf32>, vector<16x512xf32>, vector<4x16xf32> -> vector<4x16xf32>
    %c0_18 = arith.constant 0 : index
    %c0_19 = arith.constant 0 : index
    %87 = vector.load %arg4[%c0_18, %c0_19] : memref<2x16xf32, #tpu.memory_space<vmem>>, vector<2x16xf32>
    %cst_20 = arith.constant dense<0.000000e+00> : vector<4x2xf32>
    %88 = tpu.matmul %86, %87, %cst_20 {dimension_numbers = #tpu.dot_dimension_numbers<[1], [1], [0], [0], [0, 0, 1, 0], [], []>} : vector<4x16xf32>, vector<2x16xf32>, vector<4x2xf32> -> vector<4x2xf32>
    %c0_21 = arith.constant 0 : index
    %c0_22 = arith.constant 0 : index
    %89 = vector.load %arg5[%c0_21, %c0_22] : memref<1x2xf32, #tpu.memory_space<vmem>>, vector<1x2xf32>
    %90 = vector.broadcast %89 : vector<1x2xf32> to vector<4x2xf32>
    %91 = arith.addf %88, %90 : vector<4x2xf32>
    %c0_23 = arith.constant 0 : index
    %c0_24 = arith.constant 0 : index
    %92 = vector.load %arg6[%c0_23, %c0_24] : memref<4x2xf32, #tpu.memory_space<vmem>>, vector<4x2xf32>
    tpu.vector_store %arg6[%c0_23, %c0_24], %91 {strides = array<i32>} : memref<4x2xf32, #tpu.memory_space<vmem>>, vector<4x2xf32>,
    return
  }
  func.func @transform_0(%arg0: i32, %arg1: memref<4xi32, #tpu.memory_space<smem>>) -> (i32, i32) {
    %c0_i32 = arith.constant 0 : i32
    %c0_i32_0 = arith.constant 0 : i32
    %c0_i32_1 = arith.constant 0 : i32
    return %c0_i32, %c0_i32_0 : i32, i32
  }
  func.func @transform_1(%arg0: i32, %arg1: memref<4xi32, #tpu.memory_space<smem>>) -> (i32, i32) {
    %c0_i32 = arith.constant 0 : i32
    %c0_i32_0 = arith.constant 0 : i32
    %c0_i32_1 = arith.constant 0 : i32
    return %c0_i32, %c0_i32_0 : i32, i32
  }
  func.func @transform_2(%arg0: i32, %arg1: memref<4xi32, #tpu.memory_space<smem>>) -> (i32, i32) {
    %c0_i32 = arith.constant 0 : i32
    %c0_i32_0 = arith.constant 0 : i32
    %c0_i32_1 = arith.constant 0 : i32
    return %c0_i32, %c0_i32_0 : i32, i32
  }
  func.func @transform_3(%arg0: i32, %arg1: memref<4xi32, #tpu.memory_space<smem>>) -> (i32, i32) {
    %c0_i32 = arith.constant 0 : i32
    %c0_i32_0 = arith.constant 0 : i32
    %c0_i32_1 = arith.constant 0 : i32
    return %c0_i32, %c0_i32_0 : i32, i32
  }
  func.func @transform_4(%arg0: i32, %arg1: memref<4xi32, #tpu.memory_space<smem>>) -> (i32, i32) {
    %c0_i32 = arith.constant 0 : i32
    %c0_i32_0 = arith.constant 0 : i32
    %c0_i32_1 = arith.constant 0 : i32
    return %c0_i32, %c0_i32_0 : i32, i32
  }
}

</mosaic_0001>

<llo_original>
// kernel: tpu_custom_call.1
$region0: #{tpu_custom_call.1}
  #allocation0 [shape = 'u32[]', space=smem, size = 0x4, offset = 0x4, fixed_abs, tag = 'smem constant byte address 0x4 - core index']
  #allocation1 [shape = 'u32[144,128]{1,0:T(1,128)}', space=vmem, size = 0x12000, scoped, tag = 'internal scratch']
  #allocation2 [shape = 's32[1]{0}', space=sflag, size = 0x4, scoped, tag = 'scoped memory for tpu_custom_call.1']
  #allocation3 [shape = 'u8[512]{0}', space=smem, size = 0x200, scoped, tag = 'prefetched SMEM operand 0']
  %s0 = inlined_call_operand.vmem [shape: s32[4], index: 0, kind: input, shape index: {}]
  %s1 = inlined_call_operand.vmem [shape: s32[24,1], index: 1, kind: input, shape index: {}]
  %s2 = inlined_call_operand.hbm [shape: f32[16,512], index: 2, kind: input, shape index: {}]
  %s3 = inlined_call_operand.vmem [shape: f32[2,16], index: 3, kind: input, shape index: {}]
  %s4 = inlined_call_operand.vmem [shape: f32[1,2], index: 4, kind: input, shape index: {}]
  %s5 = inlined_call_operand.vmem [shape: f32[4,2], index: 5, kind: output, shape index: {}]
  %s6 = sld [smem:[#allocation0]]
  $region30: #{tpu_custom_call.1} parent=0
    _
  %s8 = ssub.s32 1, %s6
  %s9 = scalar_select 0, %s8, %s6
  %s10 = sshll.u32 %s0, 4
  %s11 = int_to_ptr.vmem [resolvable:$true] %s10
  %13 = dma.vmem_to_smem %s11, 16, [#allocation3], [#allocation2]
  %14 = dma.done [#allocation2], 16
  %15 = sfence
  $region1: #{tpu_custom_call.1} parent=0
    #allocation4 [shape = 'u8[32768]{0}', space=vmem, size = 0x8000, scoped, tag = 'input window, operand 2, single buffered']
    #allocation5 [shape = 's32[1]{0}', space=sflag, size = 0x4, scoped, tag = 'scoped memory for tpu_custom_call.1']
    %16 = vsyncpa [#allocation5], 0
    // Predicated region
    $region2: #{tpu_custom_call.1} parent=1 // pred_check
      _
    $region3: #{tpu_custom_call.1} parent=1 // pred_check_branch
      %18 = sbr.rel (0) target = $region5
    $region4: #{tpu_custom_call.1} parent=1 // pred_region
      _
    $region5: #{tpu_custom_call.1} parent=1 // pred_fallthru
      _
    // Predicated region
    $region6: #{tpu_custom_call.1} parent=1 // pred_check
      _
    $region7: #{tpu_custom_call.1} parent=1 // pred_check_branch
      %20 = sbr.rel (0) target = $region9
    $region8: #{tpu_custom_call.1} parent=1 // pred_region
      %s22 = ssub.s32 1024, 1024
      %23 = vsyncadd [#allocation5], %s22
      %s24 = sshll.u32 [#allocation4], 4
      %s25 = int_to_ptr.vmem [resolvable:$true] %s24
      %30 = dma.hbm_to_vmem [thread:$0]  %s2, 1024, %s25, [#allocation5], 512, 512, 32
    $region9: #{tpu_custom_call.1} parent=1 // pred_fallthru
      _
    // Predicated region
    $region10: #{tpu_custom_call.1} parent=1 // pred_check
      _
    $region11: #{tpu_custom_call.1} parent=1 // pred_check_branch
      %32 = sbr.rel (0) target = $region13
    $region12: #{tpu_custom_call.1} parent=1 // pred_region
      _
    $region13: #{tpu_custom_call.1} parent=1 // pred_fallthru
      _
    // Predicated region
    $region14: #{tpu_custom_call.1} parent=1 // pred_check
      _
    $region15: #{tpu_custom_call.1} parent=1 // pred_check_branch
      %34 = sbr.rel (0) target = $region17
    $region16: #{tpu_custom_call.1} parent=1 // pred_region
      _
    $region17: #{tpu_custom_call.1} parent=1 // pred_fallthru
      _
    // Predicated region
    $region18: #{tpu_custom_call.1} parent=1 // pred_check
      _
    $region19: #{tpu_custom_call.1} parent=1 // pred_check_branch
      %36 = sbr.rel (0) target = $region21
    $region20: #{tpu_custom_call.1} parent=1 // pred_region
      %37 = dma.done [#allocation5], 1024
    $region21: #{tpu_custom_call.1} parent=1 // pred_fallthru
      _
    %v38 = vlaneseq
    %v39 = vand.u32 %v38, 127
    %v40 = vadd.s32 %v39, 128
    %v41 = vadd.s32 %v39, 256
    %v42 = vadd.s32 %v39, 384
    %v43 = vld [vmem:[%s1] sm:$0xff]
    %v44 = vld [vmem:[%s1 + $0x8] sm:$0xff]
    %v45 = vld [vmem:[%s1 + $0x10] sm:$0xff]
    %46 = vset.pattern.permute.xlu0 0
    %47 = vperm.xlu0 %46, %v43
    %v48 = vpop.permute.xlu0 %47
    %49 = vset.pattern.permute.xlu0 0
    %50 = vperm.xlu0 %49, %v44
    %v51 = vpop.permute.xlu0 %50
    %52 = vset.pattern.permute.xlu0 0
    %53 = vperm.xlu0 %52, %v45
    %v54 = vpop.permute.xlu0 %53
    %vm55 = vcmp.eq.s32.totalorder %v39, %v48
    %vm56 = vcmp.eq.s32.totalorder %v40, %v48
    %vm57 = vcmp.eq.s32.totalorder %v41, %v48
    %vm58 = vcmp.eq.s32.totalorder %v42, %v48
    %vm59 = vcmp.eq.s32.totalorder %v39, %v51
    %vm60 = vcmp.eq.s32.totalorder %v40, %v51
    %vm61 = vcmp.eq.s32.totalorder %v41, %v51
    %vm62 = vcmp.eq.s32.totalorder %v42, %v51
    %vm63 = vcmp.eq.s32.totalorder %v39, %v54
    %vm64 = vcmp.eq.s32.totalorder %v40, %v54
    %vm65 = vcmp.eq.s32.totalorder %v41, %v54
    %vm66 = vcmp.eq.s32.totalorder %v42, %v54
    %v67 = vsel %vm55, 1, 0
    %v68 = vsel %vm56, 1, 0
    %v69 = vsel %vm57, 1, 0
    %v70 = vsel %vm58, 1, 0
    %v71 = vsel %vm59, 1, 0
    %v72 = vsel %vm60, 1, 0
    %v73 = vsel %vm61, 1, 0
    %v74 = vsel %vm62, 1, 0
    %v75 = vsel %vm63, 1, 0
    %v76 = vsel %vm64, 1, 0
    %v77 = vsel %vm65, 1, 0
    %v78 = vsel %vm66, 1, 0
    %v79 = vcvt.s32.f32 %v67
    %v80 = vcvt.s32.f32 %v68
    %v81 = vcvt.s32.f32 %v69
    %v82 = vcvt.s32.f32 %v70
    %v83 = vcvt.s32.f32 %v71
    %v84 = vcvt.s32.f32 %v72
    %v85 = vcvt.s32.f32 %v73
    %v86 = vcvt.s32.f32 %v74
    %v87 = vcvt.s32.f32 %v75
    %v88 = vcvt.s32.f32 %v76
    %v89 = vcvt.s32.f32 %v77
    %v90 = vcvt.s32.f32 %v78
    %v91 = vlaneseq
    %v92 = vshrl.u32 %v91, 7
    %s93 = sld [smem:[#allocation3]]
    %s94 = sld [smem:[#allocation3 + $0x1]]
    %s95 = ssub.s32 %s94, %s93
    %s96 = scvt.s32.f32 %s95
    %s97 = smax.f32 %s96, 1.0
    %v98 = vstv %s97
    %v99 = vrcp.pop %v98
    %s100 = vtos %v99
    %vm101 = vcmp.eq.s32.totalorder %v92, 0
    %v102 = vstv %s93
    %vm103 = vcmp.ge.s32.totalorder %v39, %v102
    %vm104 = vmand %vm101, %vm103
    %v105 = vstv %s94
    %vm106 = vcmp.lt.s32.totalorder %v39, %v105
    %vm107 = vmand %vm104, %vm106
    %v108 = vsel %vm107, 1, 0
    %v109 = vcvt.s32.f32 %v108
    %v110 = vstv %s100
    %v111 = vmul.f32 %v109, %v110
    %v112 = vadd.f32 %v111, 0.0
    %s113 = sld [smem:[#allocation3 + $0x2]]
    %s114 = ssub.s32 %s113, %s94
    %s115 = scvt.s32.f32 %s114
    %s116 = smax.f32 %s115, 1.0
    %v117 = vstv %s116
    %v118 = vrcp.pop %v117
    %s119 = vtos %v118
    %vm120 = vcmp.eq.s32.totalorder %v92, 1
    %vm121 = vcmp.ge.s32.totalorder %v39, %v105
    %vm122 = vmand %vm120, %vm121
    %v123 = vstv %s113
    %vm124 = vcmp.lt.s32.totalorder %v39, %v123
    %vm125 = vmand %vm122, %vm124
    %v126 = vsel %vm125, 1, 0
    %v127 = vcvt.s32.f32 %v126
    %v128 = vstv %s119
    %v129 = vmul.f32 %v127, %v128
    %v130 = vadd.f32 %v112, %v129
    %s131 = sld [smem:[#allocation3 + $0x3]]
    %s132 = ssub.s32 %s131, %s113
    %s133 = scvt.s32.f32 %s132
    %s134 = smax.f32 %s133, 1.0
    %v135 = vstv %s134
    %v136 = vrcp.pop %v135
    %s137 = vtos %v136
    %vm138 = vcmp.eq.s32.totalorder %v92, 2
    %vm139 = vcmp.ge.s32.totalorder %v39, %v123
    %vm140 = vmand %vm138, %vm139
    %v141 = vstv %s131
    %vm142 = vcmp.lt.s32.totalorder %v39, %v141
    %vm143 = vmand %vm140, %vm142
    %v144 = vsel %vm143, 1, 0
    %v145 = vcvt.s32.f32 %v144
    %v146 = vstv %s137
    %v147 = vmul.f32 %v145, %v146
    %v148 = vadd.f32 %v130, %v147
    %s149 = ssub.s32 24, %s131
    %s150 = scvt.s32.f32 %s149
    %s151 = smax.f32 %s150, 1.0
    %v152 = vstv %s151
    %v153 = vrcp.pop %v152
    %s154 = vtos %v153
    %vm155 = vcmp.eq.s32.totalorder %v92, 3
    %vm156 = vcmp.ge.s32.totalorder %v39, %v141
    %vm157 = vmand %vm155, %vm156
    %vm158 = vcmp.lt.s32.totalorder %v39, 24
    %vm159 = vmand %vm157, %vm158
    %v160 = vsel %vm159, 1, 0
    %v161 = vcvt.s32.f32 %v160
    %v162 = vstv %s154
    %v163 = vmul.f32 %v161, %v162
    %v164 = vadd.f32 %v148, %v163
    %vm165 = vcmask 195584
    %v167 = vsel %vm165, %v164, 0
    %169 = vmatprep.subr.mxu0 0.0
    %170 = vmatpush1.msra.mxu0 0.0
    %171 = vmatprep.subr.mxu0 0.0
    %172 = vmatpush1.msra.mxu0 0.0
    %173 = vmatprep.subr.mxu0 0.0
    %174 = vmatpush1.msra.mxu0 0.0
    %175 = vmatprep.subr.mxu0 0.0
    %176 = vmatpush1.msra.mxu0 0.0
    %177 = vmatprep.subr.mxu0 0.0
    %178 = vmatpush1.msra.mxu0 0.0
    %179 = vmatprep.subr.mxu0 0.0
    %180 = vmatpush1.msra.mxu0 0.0
    %181 = vmatprep.subr.mxu0 0.0
    %182 = vmatpush1.msra.mxu0 0.0
    %183 = vmatprep.subr.mxu0 0.0
    %184 = vmatpush1.msra.mxu0 0.0
    %185 = vmatprep.subr.mxu0 0.0
    %186 = vmatpush1.msra.mxu0 0.0
    %187 = vmatprep.subr.mxu0 0.0
    %188 = vmatpush1.msra.mxu0 0.0
    %189 = vmatprep.subr.mxu0 0.0
    %190 = vmatpush1.msra.mxu0 0.0
    %191 = vmatprep.subr.mxu0 0.0
    %192 = vmatpush1.msra.mxu0 0.0
    %193 = vmatprep.subr.mxu0 0.0
    %194 = vmatpush1.msra.mxu0 0.0
    %195 = vmatprep.subr.mxu0 %v88
    %196 = vmatpush1.msra.mxu0 %v87
    %197 = vmatprep.subr.mxu0 %v84
    %198 = vmatpush1.msra.mxu0 %v83
    %199 = vmatprep.subr.mxu0 %v80
    %200 = vmatpush1.msra.mxu0 %v79
    %201 = vmatprep.subr.mxu0 0.0
    %202 = vmatpush2.msra.mxu0 0.0
    %203 = vmatprep.subr.mxu0 0.0
    %204 = vmatpush2.msra.mxu0 0.0
    %205 = vmatprep.subr.mxu0 0.0
    %206 = vmatpush2.msra.mxu0 0.0
    %207 = vmatprep.subr.mxu0 0.0
    %208 = vmatpush2.msra.mxu0 0.0
    %209 = vmatprep.subr.mxu0 0.0
    %210 = vmatpush2.msra.mxu0 0.0
    %211 = vmatprep.subr.mxu0 0.0
    %212 = vmatpush2.msra.mxu0 0.0
    %213 = vmatprep.subr.mxu0 0.0
    %214 = vmatpush2.msra.mxu0 0.0
    %215 = vmatprep.subr.mxu0 0.0
    %216 = vmatpush2.msra.mxu0 0.0
    %217 = vmatprep.subr.mxu0 0.0
    %218 = vmatpush2.msra.mxu0 0.0
    %219 = vmatprep.subr.mxu0 0.0
    %220 = vmatpush2.msra.mxu0 0.0
    %221 = vmatprep.subr.mxu0 0.0
    %222 = vmatpush2.msra.mxu0 0.0
    %223 = vmatprep.subr.mxu0 0.0
    %224 = vmatpush2.msra.mxu0 0.0
    %225 = vmatprep.subr.mxu0 0.0
    %226 = vmatpush2.msra.mxu0 0.0
    %227 = vmatprep.subr.mxu0 0.0
    %228 = vmatpush2.msra.mxu0 0.0
    %229 = vmatprep.subr.mxu0 0.0
    %230 = vmatpush2.msra.mxu0 0.0
    %231 = vmatprep.subr.mxu0 0.0
    %232 = vmatpush2.msra.mxu0 0.0
    %233 = vmatprep.mubr.f32.mxu0 0.0
    %234 = vmatmul.mubr.f32.gmra.mxu0 %v167
    %v235 = vpop.f32.mrf.mxu0
    %v236 = vadd.f32 0.0, %v235
    %v237 = vpop.f32.mrf.mxu0
    %v238 = vadd.f32 0.0, %v237
    %239 = vdwg.mxu0
    %240 = vmatprep.subr.mxu0 0.0
    %241 = vmatpush1.msra.mxu0 0.0
    %242 = vmatprep.subr.mxu0 0.0
    %243 = vmatpush1.msra.mxu0 0.0
    %244 = vmatprep.subr.mxu0 0.0
    %245 = vmatpush1.msra.mxu0 0.0
    %246 = vmatprep.subr.mxu0 0.0
    %247 = vmatpush1.msra.mxu0 0.0
    %248 = vmatprep.subr.mxu0 0.0
    %249 = vmatpush1.msra.mxu0 0.0
    %250 = vmatprep.subr.mxu0 0.0
    %251 = vmatpush1.msra.mxu0 0.0
    %252 = vmatprep.subr.mxu0 0.0
    %253 = vmatpush1.msra.mxu0 0.0
    %254 = vmatprep.subr.mxu0 0.0
    %255 = vmatpush1.msra.mxu0 0.0
    %256 = vmatprep.subr.mxu0 0.0
    %257 = vmatpush1.msra.mxu0 0.0
    %258 = vmatprep.subr.mxu0 0.0
    %259 = vmatpush1.msra.mxu0 0.0
    %260 = vmatprep.subr.mxu0 0.0
    %261 = vmatpush1.msra.mxu0 0.0
    %262 = vmatprep.subr.mxu0 0.0
    %263 = vmatpush1.msra.mxu0 0.0
    %264 = vmatprep.subr.mxu0 0.0
    %265 = vmatpush1.msra.mxu0 0.0
    %266 = vmatprep.subr.mxu0 %v90
    %267 = vmatpush1.msra.mxu0 %v89
    %268 = vmatprep.subr.mxu0 %v86
    %269 = vmatpush1.msra.mxu0 %v85
    %270 = vmatprep.subr.mxu0 %v82
    %271 = vmatpush1.msra.mxu0 %v81
    %272 = vmatprep.subr.mxu0 0.0
    %273 = vmatpush2.msra.mxu0 0.0
    %274 = vmatprep.subr.mxu0 0.0
    %275 = vmatpush2.msra.mxu0 0.0
    %276 = vmatprep.subr.mxu0 0.0
    %277 = vmatpush2.msra.mxu0 0.0
    %278 = vmatprep.subr.mxu0 0.0
    %279 = vmatpush2.msra.mxu0 0.0
    %280 = vmatprep.subr.mxu0 0.0
    %281 = vmatpush2.msra.mxu0 0.0
    %282 = vmatprep.subr.mxu0 0.0
    %283 = vmatpush2.msra.mxu0 0.0
    %284 = vmatprep.subr.mxu0 0.0
    %285 = vmatpush2.msra.mxu0 0.0
    %286 = vmatprep.subr.mxu0 0.0
    %287 = vmatpush2.msra.mxu0 0.0
    %288 = vmatprep.subr.mxu0 0.0
    %289 = vmatpush2.msra.mxu0 0.0
    %290 = vmatprep.subr.mxu0 0.0
    %291 = vmatpush2.msra.mxu0 0.0
    %292 = vmatprep.subr.mxu0 0.0
    %293 = vmatpush2.msra.mxu0 0.0
    %294 = vmatprep.subr.mxu0 0.0
    %295 = vmatpush2.msra.mxu0 0.0
    %296 = vmatprep.subr.mxu0 0.0
    %297 = vmatpush2.msra.mxu0 0.0
    %298 = vmatprep.subr.mxu0 0.0
    %299 = vmatpush2.msra.mxu0 0.0
    %300 = vmatprep.subr.mxu0 0.0
    %301 = vmatpush2.msra.mxu0 0.0
    %302 = vmatprep.subr.mxu0 0.0
    %303 = vmatpush2.msra.mxu0 0.0
    %304 = vmatprep.mubr.f32.mxu0 0.0
    %305 = vmatmul.mubr.f32.gmra.mxu0 %v167
    %v306 = vpop.f32.mrf.mxu0
    %v307 = vadd.f32 0.0, %v306
    %v308 = vpop.f32.mrf.mxu0
    %v309 = vadd.f32 0.0, %v308
    %310 = vdwg.mxu0
    %v311 = vld [vmem:[#allocation4] sm:$0xff]
    %v312 = vld [vmem:[#allocation4 + $0x8] sm:$0xff]
    %v313 = vld [vmem:[#allocation4 + $0x10] sm:$0xff]
    %v314 = vld [vmem:[#allocation4 + $0x18] sm:$0xff]
    %v315 = vld [vmem:[#allocation4 + $0x20] sm:$0xff]
    %v316 = vld [vmem:[#allocation4 + $0x28] sm:$0xff]
    %v317 = vld [vmem:[#allocation4 + $0x30] sm:$0xff]
    %v318 = vld [vmem:[#allocation4 + $0x38] sm:$0xff]
    %319 = vmatprep.subr.mxu0 0.0
    %320 = vmatpush1.xpose.msra.mxu0 0.0
    %321 = vmatprep.subr.mxu0 0.0
    %322 = vmatpush1.xpose.msra.mxu0 0.0
    %323 = vmatprep.subr.mxu0 0.0
    %324 = vmatpush1.xpose.msra.mxu0 0.0
    %325 = vmatprep.subr.mxu0 0.0
    %326 = vmatpush1.xpose.msra.mxu0 0.0
    %327 = vmatprep.subr.mxu0 0.0
    %328 = vmatpush1.xpose.msra.mxu0 0.0
    %329 = vmatprep.subr.mxu0 0.0
    %330 = vmatpush1.xpose.msra.mxu0 0.0
    %331 = vmatprep.subr.mxu0 0.0
    %332 = vmatpush1.xpose.msra.mxu0 0.0
    %333 = vmatprep.subr.mxu0 0.0
    %334 = vmatpush1.xpose.msra.mxu0 0.0
    %335 = vmatprep.subr.mxu0 0.0
    %336 = vmatpush1.xpose.msra.mxu0 0.0
    %337 = vmatprep.subr.mxu0 0.0
    %338 = vmatpush1.xpose.msra.mxu0 0.0
    %339 = vmatprep.subr.mxu0 0.0
    %340 = vmatpush1.xpose.msra.mxu0 0.0
    %341 = vmatprep.subr.mxu0 0.0
    %342 = vmatpush1.xpose.msra.mxu0 0.0
    %343 = vmatprep.subr.mxu0 0.0
    %344 = vmatpush1.xpose.msra.mxu0 0.0
    %345 = vmatprep.subr.mxu0 0.0
    %346 = vmatpush1.xpose.msra.mxu0 0.0
    %347 = vmatprep.subr.mxu0 %v316
    %348 = vmatpush1.xpose.msra.mxu0 %v315
    %349 = vmatprep.subr.mxu0 %v312
    %350 = vmatpush1.xpose.msra.mxu0 %v311
    %351 = vmatprep.subr.mxu0 0.0
    %352 = vmatpush2.xpose.msra.mxu0 0.0
    %353 = vmatprep.subr.mxu0 0.0
    %354 = vmatpush2.xpose.msra.mxu0 0.0
    %355 = vmatprep.subr.mxu0 0.0
    %356 = vmatpush2.xpose.msra.mxu0 0.0
    %357 = vmatprep.subr.mxu0 0.0
    %358 = vmatpush2.xpose.msra.mxu0 0.0
    %359 = vmatprep.subr.mxu0 0.0
    %360 = vmatpush2.xpose.msra.mxu0 0.0
    %361 = vmatprep.subr.mxu0 0.0
    %362 = vmatpush2.xpose.msra.mxu0 0.0
    %363 = vmatprep.subr.mxu0 0.0
    %364 = vmatpush2.xpose.msra.mxu0 0.0
    %365 = vmatprep.subr.mxu0 0.0
    %366 = vmatpush2.xpose.msra.mxu0 0.0
    %367 = vmatprep.subr.mxu0 0.0
    %368 = vmatpush2.xpose.msra.mxu0 0.0
    %369 = vmatprep.subr.mxu0 0.0
    %370 = vmatpush2.xpose.msra.mxu0 0.0
    %371 = vmatprep.subr.mxu0 0.0
    %372 = vmatpush2.xpose.msra.mxu0 0.0
    %373 = vmatprep.subr.mxu0 0.0
    %374 = vmatpush2.xpose.msra.mxu0 0.0
    %375 = vmatprep.subr.mxu0 0.0
    %376 = vmatpush2.xpose.msra.mxu0 0.0
    %377 = vmatprep.subr.mxu0 0.0
    %378 = vmatpush2.xpose.msra.mxu0 0.0
    %379 = vmatprep.subr.mxu0 0.0
    %380 = vmatpush2.xpose.msra.mxu0 0.0
    %381 = vmatprep.subr.mxu0 0.0
    %382 = vmatpush2.xpose.msra.mxu0 0.0
    %383 = vmatprep.mubr.f32.mxu0 %v238
    %384 = vmatmul.mubr.f32.gmra.mxu0 %v236
    %v385 = vpop.f32.mrf.mxu0
    %v386 = vadd.f32 0.0, %v385
    %v387 = vpop.f32.mrf.mxu0
    %388 = vdwg.mxu0
    %389 = vmatprep.subr.mxu0 0.0
    %390 = vmatpush1.xpose.msra.mxu0 0.0
    %391 = vmatprep.subr.mxu0 0.0
    %392 = vmatpush1.xpose.msra.mxu0 0.0
    %393 = vmatprep.subr.mxu0 0.0
    %394 = vmatpush1.xpose.msra.mxu0 0.0
    %395 = vmatprep.subr.mxu0 0.0
    %396 = vmatpush1.xpose.msra.mxu0 0.0
    %397 = vmatprep.subr.mxu0 0.0
    %398 = vmatpush1.xpose.msra.mxu0 0.0
    %399 = vmatprep.subr.mxu0 0.0
    %400 = vmatpush1.xpose.msra.mxu0 0.0
    %401 = vmatprep.subr.mxu0 0.0
    %402 = vmatpush1.xpose.msra.mxu0 0.0
    %403 = vmatprep.subr.mxu0 0.0
    %404 = vmatpush1.xpose.msra.mxu0 0.0
    %405 = vmatprep.subr.mxu0 0.0
    %406 = vmatpush1.xpose.msra.mxu0 0.0
    %407 = vmatprep.subr.mxu0 0.0
    %408 = vmatpush1.xpose.msra.mxu0 0.0
    %409 = vmatprep.subr.mxu0 0.0
    %410 = vmatpush1.xpose.msra.mxu0 0.0
    %411 = vmatprep.subr.mxu0 0.0
    %412 = vmatpush1.xpose.msra.mxu0 0.0
    %413 = vmatprep.subr.mxu0 0.0
    %414 = vmatpush1.xpose.msra.mxu0 0.0
    %415 = vmatprep.subr.mxu0 0.0
    %416 = vmatpush1.xpose.msra.mxu0 0.0
    %417 = vmatprep.subr.mxu0 %v318
    %418 = vmatpush1.xpose.msra.mxu0 %v317
    %419 = vmatprep.subr.mxu0 %v314
    %420 = vmatpush1.xpose.msra.mxu0 %v313
    %421 = vmatprep.subr.mxu0 0.0
    %422 = vmatpush2.xpose.msra.mxu0 0.0
    %423 = vmatprep.subr.mxu0 0.0
    %424 = vmatpush2.xpose.msra.mxu0 0.0
    %425 = vmatprep.subr.mxu0 0.0
    %426 = vmatpush2.xpose.msra.mxu0 0.0
    %427 = vmatprep.subr.mxu0 0.0
    %428 = vmatpush2.xpose.msra.mxu0 0.0
    %429 = vmatprep.subr.mxu0 0.0
    %430 = vmatpush2.xpose.msra.mxu0 0.0
    %431 = vmatprep.subr.mxu0 0.0
    %432 = vmatpush2.xpose.msra.mxu0 0.0
    %433 = vmatprep.subr.mxu0 0.0
    %434 = vmatpush2.xpose.msra.mxu0 0.0
    %435 = vmatprep.subr.mxu0 0.0
    %436 = vmatpush2.xpose.msra.mxu0 0.0
    %437 = vmatprep.subr.mxu0 0.0
    %438 = vmatpush2.xpose.msra.mxu0 0.0
    %439 = vmatprep.subr.mxu0 0.0
    %440 = vmatpush2.xpose.msra.mxu0 0.0
    %441 = vmatprep.subr.mxu0 0.0
    %442 = vmatpush2.xpose.msra.mxu0 0.0
    %443 = vmatprep.subr.mxu0 0.0
    %444 = vmatpush2.xpose.msra.mxu0 0.0
    %445 = vmatprep.subr.mxu0 0.0
    %446 = vmatpush2.xpose.msra.mxu0 0.0
    %447 = vmatprep.subr.mxu0 0.0
    %448 = vmatpush2.xpose.msra.mxu0 0.0
    %449 = vmatprep.subr.mxu0 0.0
    %450 = vmatpush2.xpose.msra.mxu0 0.0
    %451 = vmatprep.subr.mxu0 0.0
    %452 = vmatpush2.xpose.msra.mxu0 0.0
    %453 = vmatprep.mubr.f32.mxu0 %v309
    %454 = vmatmul.mubr.f32.gmra.mxu0 %v307
    %v455 = vpop.f32.mrf.mxu0
    %v456 = vadd.f32 %v386, %v455
    %v457 = vpop.f32.mrf.mxu0
    %458 = vdwg.mxu0
    %v459 = vld [vmem:[%s3] sm:$0x3]
    %v460 = vld [vmem:[%s4] sm:$0x1]
    %v462 = vlaneseq
    %v463 = vshrl.u32 %v462, 7
    %v464 = vsub.s32 0, %v463
    %v465 = vrot.slane %v460, %v464
    %vm467 = vcmask 130048
    %v469 = vsel %vm467, %v456, 0
    %v472 = vsel %vm467, %v459, 0
    %474 = vmatprep.subr.mxu0 0.0
    %475 = vmatpush1.xpose.msra.mxu0 0.0
    %476 = vmatprep.subr.mxu0 0.0
    %477 = vmatpush1.xpose.msra.mxu0 0.0
    %478 = vmatprep.subr.mxu0 0.0
    %479 = vmatpush1.xpose.msra.mxu0 0.0
    %480 = vmatprep.subr.mxu0 0.0
    %481 = vmatpush1.xpose.msra.mxu0 0.0
    %482 = vmatprep.subr.mxu0 0.0
    %483 = vmatpush1.xpose.msra.mxu0 0.0
    %484 = vmatprep.subr.mxu0 0.0
    %485 = vmatpush1.xpose.msra.mxu0 0.0
    %486 = vmatprep.subr.mxu0 0.0
    %487 = vmatpush1.xpose.msra.mxu0 0.0
    %488 = vmatprep.subr.mxu0 0.0
    %489 = vmatpush1.xpose.msra.mxu0 0.0
    %490 = vmatprep.subr.mxu0 0.0
    %491 = vmatpush1.xpose.msra.mxu0 0.0
    %492 = vmatprep.subr.mxu0 0.0
    %493 = vmatpush1.xpose.msra.mxu0 0.0
    %494 = vmatprep.subr.mxu0 0.0
    %495 = vmatpush1.xpose.msra.mxu0 0.0
    %496 = vmatprep.subr.mxu0 0.0
    %497 = vmatpush1.xpose.msra.mxu0 0.0
    %498 = vmatprep.subr.mxu0 0.0
    %499 = vmatpush1.xpose.msra.mxu0 0.0
    %500 = vmatprep.subr.mxu0 0.0
    %501 = vmatpush1.xpose.msra.mxu0 0.0
    %502 = vmatprep.subr.mxu0 0.0
    %503 = vmatpush1.xpose.msra.mxu0 0.0
    %504 = vmatprep.subr.mxu0 0.0
    %505 = vmatpush1.xpose.msra.mxu0 %v472
    %506 = vmatprep.subr.mxu0 0.0
    %507 = vmatpush2.xpose.msra.mxu0 0.0
    %508 = vmatprep.subr.mxu0 0.0
    %509 = vmatpush2.xpose.msra.mxu0 0.0
    %510 = vmatprep.subr.mxu0 0.0
    %511 = vmatpush2.xpose.msra.mxu0 0.0
    %512 = vmatprep.subr.mxu0 0.0
    %513 = vmatpush2.xpose.msra.mxu0 0.0
    %514 = vmatprep.subr.mxu0 0.0
    %515 = vmatpush2.xpose.msra.mxu0 0.0
    %516 = vmatprep.subr.mxu0 0.0
    %517 = vmatpush2.xpose.msra.mxu0 0.0
    %518 = vmatprep.subr.mxu0 0.0
    %519 = vmatpush2.xpose.msra.mxu0 0.0
    %520 = vmatprep.subr.mxu0 0.0
    %521 = vmatpush2.xpose.msra.mxu0 0.0
    %522 = vmatprep.subr.mxu0 0.0
    %523 = vmatpush2.xpose.msra.mxu0 0.0
    %524 = vmatprep.subr.mxu0 0.0
    %525 = vmatpush2.xpose.msra.mxu0 0.0
    %526 = vmatprep.subr.mxu0 0.0
    %527 = vmatpush2.xpose.msra.mxu0 0.0
    %528 = vmatprep.subr.mxu0 0.0
    %529 = vmatpush2.xpose.msra.mxu0 0.0
    %530 = vmatprep.subr.mxu0 0.0
    %531 = vmatpush2.xpose.msra.mxu0 0.0
    %532 = vmatprep.subr.mxu0 0.0
    %533 = vmatpush2.xpose.msra.mxu0 0.0
    %534 = vmatprep.subr.mxu0 0.0
    %535 = vmatpush2.xpose.msra.mxu0 0.0
    %536 = vmatprep.subr.mxu0 0.0
    %537 = vmatpush2.xpose.msra.mxu0 0.0
    %538 = vmatprep.mubr.f32.mxu0 0.0
    %539 = vmatmul.mubr.f32.gmra.mxu0 %v469
    %v540 = vpop.f32.mrf.mxu0
    %v541 = vadd.f32 %v465, %v540
    %v542 = vpop.f32.mrf.mxu0
    %543 = vdwg.mxu0
    %vm544 = vcmask 11264
    %545 = vst.msk [vmem:[%s5] sm:$0xf] %vm544, %v541
    // Predicated region
    $region22: #{tpu_custom_call.1} parent=1 // pred_check
      _
    $region23: #{tpu_custom_call.1} parent=1 // pred_check_branch
      %547 = sbr.rel (0) target = $region25
    $region24: #{tpu_custom_call.1} parent=1 // pred_region
      _
    $region25: #{tpu_custom_call.1} parent=1 // pred_fallthru
      _
    // Predicated region
    $region26: #{tpu_custom_call.1} parent=1 // pred_check
      _
    $region27: #{tpu_custom_call.1} parent=1 // pred_check_branch
      %549 = sbr.rel (0) target = $region29
    $region28: #{tpu_custom_call.1} parent=1 // pred_region
      _
    $region29: #{tpu_custom_call.1} parent=1 // pred_fallthru
      _
    %550 = vsyncpa [#allocation5], 1

</llo_original>
